<compile_context>
chip_gen: v7x
topology: tpu7x:2x2x1
jax: 0.10.0
libtpu: 0.0.40
codegen_flags: <defaults>
</compile_context>

<pallas_src>
import functools
import math

import jax
import jax.numpy as jnp
import numpy as np
from jax.experimental import pallas as pl
from jax.experimental.pallas import tpu as pltpu


# ---------------------------------------------------------------------------
# Fused kernel: one grid step == one lane-dense block of N*H*W pixels
# ---------------------------------------------------------------------------
def _fused_conv_decomposed_kernel(col_ref, w1_ref, shift1_ref, w2_ref,
                                  shift2_ref, o_ref):
    # col_ref    : (KKpad, NPblk)  im2col patches; taps on sublanes (zero-padded
    #                              to a multiple of 128), pixels on lanes
    # w1_ref     : (Cin, KKpad)    BN1-scale-folded, compute dtype
    # shift1_ref : (Cin, 1)        f32
    # w2_ref     : (Cout, Cin)     BN2-scale-folded, f32
    # shift2_ref : (Cout, 1)       f32
    # o_ref      : (Cout, NPblk)   lane-dense output block
    #
    # stage 1: KxK full conv == single MXU dot, contraction = KKpad (>=128)
    y = jnp.dot(w1_ref[...], col_ref[...],
                preferred_element_type=jnp.float32)        # (Cin, NPblk) f32
    y = jnp.maximum(y + shift1_ref[...], 0.0)              # BN1 shift + ReLU

    # stage 2: 1x1 conv (tiny contraction = Cin); keep f32, reuse accumulator
    z = jnp.dot(w2_ref[...], y,
                preferred_element_type=jnp.float32)        # (Cout, NPblk) f32
    z = jnp.maximum(z + shift2_ref[...], 0.0)              # BN2 shift + ReLU

    o_ref[...] = z.astype(o_ref.dtype)


def _pixel_block(np_total, max_block=8192):
    """Lane-dense pixel block: multiple of 128 dividing np_total, capped, and
    yielding >=2 grid steps when possible (v7x has 2 TensorCores)."""
    target = min(np_total, max_block)
    if np_total >= 256:
        target = min(target, np_total // 2)
    blk = max(128, (target // 128) * 128)
    while blk > 128 and np_total % blk:
        blk -= 128
    return blk if np_total % blk == 0 else np_total


# ---------------------------------------------------------------------------
# Wrapper: NCHW in, NCHW out (single pallas_call; patches built wrapper-side)
# ---------------------------------------------------------------------------
def conv_decomposed_forward(x_nchw, params, *, kernel_size,
                            compute_dtype=jnp.bfloat16):
    N, Cin, H, W = x_nchw.shape
    K = kernel_size
    assert K % 2 == 1, "kernel_size must be odd (pad=(K-1)//2 == 'SAME')"
    P = (K - 1) // 2

    w1_mat = params["w1_mat"]                              # (Cin, Cin*K*K)
    w2_mat = params["w2_mat"]                              # (Cout, Cin)
    Cout = w2_mat.shape[0]
    KK = Cin * K * K
    KKpad = ((KK + 127) // 128) * 128                      # taps -> mult. of 128

    NP = N * H * W
    assert NP % 128 == 0, "N*H*W must be a multiple of 128"
    npblk = _pixel_block(NP)

    # --- wrapper-side im2col: one grouped identity conv (exact, f32 lhs). ---
    # tap ordering = c*K*K + kh*K + kw (channel-major, filter row-major),
    # matching params["w1_mat"].
    patches = jax.lax.conv_general_dilated_patches(
        x_nchw, filter_shape=(K, K), window_strides=(1, 1),
        padding=[(P, P), (P, P)],
        dimension_numbers=("NCHW", "OIHW", "NCHW"),
        precision=jax.lax.Precision.HIGHEST)               # (N, Cin*K*K, H, W)
    patches = patches.reshape(N, KK, H * W)
    patches = jnp.transpose(patches, (1, 0, 2)).reshape(KK, NP)
    patches = jnp.pad(patches, ((0, KKpad - KK), (0, 0))).astype(compute_dtype)

    w1 = jnp.pad(w1_mat, ((0, 0), (0, KKpad - KK))).astype(compute_dtype)
    w2 = w2_mat.astype(jnp.float32)
    shift1 = params["bn1_shift"].reshape(Cin, 1).astype(jnp.float32)
    shift2 = params["bn2_shift"].reshape(Cout, 1).astype(jnp.float32)

    out = pl.pallas_call(
        _fused_conv_decomposed_kernel,
        out_shape=jax.ShapeDtypeStruct((Cout, NP), x_nchw.dtype),
        grid_spec=pltpu.PrefetchScalarGridSpec(
            num_scalar_prefetch=0,
            grid=(NP // npblk,),
            in_specs=[
                pl.BlockSpec((KKpad, npblk), lambda p: (0, p)),
                pl.BlockSpec((Cin, KKpad), lambda p: (0, 0)),
                pl.BlockSpec((Cin, 1), lambda p: (0, 0)),
                pl.BlockSpec((Cout, Cin), lambda p: (0, 0)),
                pl.BlockSpec((Cout, 1), lambda p: (0, 0)),
            ],
            out_specs=pl.BlockSpec((Cout, npblk), lambda p: (0, p)),
        ),
        compiler_params=pltpu.CompilerParams(
            dimension_semantics=("parallel",)),
    )(patches, w1, shift1, w2, shift2)

    # (Cout, N*H*W) -> (N, Cout, H, W): tiny XLA transpose in the wrapper.
    return jnp.transpose(out.reshape(Cout, N, H, W), (1, 0, 2, 3))


# ---------------------------------------------------------------------------
# Parameter construction (PyTorch-equivalent init + BN folding)
# ---------------------------------------------------------------------------
def init_params(key, in_channels, out_channels, kernel_size, eps=1e-5):
    k1, k2 = jax.random.split(key)
    # conv weights in PyTorch layout (O, I, Kh, Kw); weights_init-style std.
    std1 = math.sqrt(2.0 / (kernel_size * kernel_size * in_channels))
    std2 = math.sqrt(2.0 / (1 * 1 * out_channels))
    w1_oikk = jax.random.normal(
        k1, (in_channels, in_channels, kernel_size, kernel_size),
        jnp.float32) * std1
    w2_oikk = jax.random.normal(
        k2, (out_channels, in_channels, 1, 1), jnp.float32) * std2

    # BatchNorm (inference, fresh-module defaults): gamma=1, beta=0,
    # running_mean=0, running_var=1 -> folded per-channel scale/shift.
    def bn_fold(c):
        gamma = jnp.ones((c,), jnp.float32)
        beta = jnp.zeros((c,), jnp.float32)
        mean = jnp.zeros((c,), jnp.float32)
        var = jnp.ones((c,), jnp.float32)
        scale = gamma / jnp.sqrt(var + eps)
        return scale, beta - mean * scale

    bn1_scale, bn1_shift = bn_fold(in_channels)
    bn2_scale, bn2_shift = bn_fold(out_channels)

    # kernel-side weights, BN scale folded into the output channel.
    # column order matches conv_general_dilated_patches(NCHW/OIHW):
    #   tap index = c*K*K + kh*K + kw  ->  plain (O, I*Kh*Kw) reshape.
    w1_mat = w1_oikk.reshape(in_channels,
                             in_channels * kernel_size * kernel_size)
    w1_mat = w1_mat * bn1_scale[:, None]
    w2_mat = w2_oikk[:, :, 0, 0] * bn2_scale[:, None]

    # raw (unfolded) weights kept only for the pure-JAX reference check.
    w1_hwio = jnp.transpose(w1_oikk, (2, 3, 1, 0))
    w2_io = jnp.transpose(w2_oikk[:, :, 0, 0], (1, 0))

    return dict(w1_mat=w1_mat, w2_mat=w2_mat,
                bn1_shift=bn1_shift, bn2_shift=bn2_shift,
                bn1_scale=bn1_scale, bn2_scale=bn2_scale,
                w1_hwio=w1_hwio, w2_io=w2_io)


def _reference_forward(x_nchw, params):
    """Pure-JAX reference (lax.conv, full f32 precision) for correctness."""
    x = jnp.transpose(x_nchw, (0, 2, 3, 1))
    y = jax.lax.conv_general_dilated(
        x, params["w1_hwio"], window_strides=(1, 1), padding="SAME",
        dimension_numbers=("NHWC", "HWIO", "NHWC"),
        precision=jax.lax.Precision.HIGHEST)
    y = jnp.maximum(y * params["bn1_scale"] + params["bn1_shift"], 0.0)
    y = jnp.einsum("nhwc,co->nhwo", y, params["w2_io"],
                   precision=jax.lax.Precision.HIGHEST)
    y = jnp.maximum(y * params["bn2_scale"] + params["bn2_shift"], 0.0)
    return jnp.transpose(y, (0, 3, 1, 2))


if __name__ == "__main__":
    # small shapes consistent with the module (decoder uses kernel_size=5)
    N, Cin, Cout, H, W, K = 2, 4, 8, 16, 16, 5

    key = jax.random.PRNGKey(0)
    kx, kp = jax.random.split(key)
    x = jax.random.normal(kx, (N, Cin, H, W), jnp.float32)   # NCHW input
    params = init_params(kp, Cin, Cout, K)

    fwd = jax.jit(conv_decomposed_forward,
                  static_argnames=("kernel_size", "compute_dtype"))

    ref = jax.block_until_ready(_reference_forward(x, params))

    # f32-operand path: tight check against the high-precision reference.
    out_f32 = jax.block_until_ready(
        fwd(x, params, kernel_size=K, compute_dtype=jnp.float32))
    assert out_f32.shape == (N, Cout, H, W)
    np.testing.assert_allclose(np.asarray(out_f32), np.asarray(ref),
                               rtol=1e-4, atol=1e-4)

    # default bf16-operand (f32-accumulate) path: looser tolerance (expected
    # precision loss, not a bug).
    out_bf16 = jax.block_until_ready(fwd(x, params, kernel_size=K))
    assert out_bf16.shape == (N, Cout, H, W)
    np.testing.assert_allclose(np.asarray(out_bf16), np.asarray(ref),
                               rtol=5e-2, atol=5e-2)

    print("KERNEL_OK")
</pallas_src>

<mosaic_0001>
module attributes {stable_mosaic.version = 11 : i64} {
  func.func @_fused_conv_decomposed_kernel(%arg0: i32, %arg1: memref<128x256xf32, #tpu.memory_space<vmem>>, %arg2: memref<4x128xf32, #tpu.memory_space<vmem>>, %arg3: memref<4x1xf32, #tpu.memory_space<vmem>>, %arg4: memref<8x4xf32, #tpu.memory_space<vmem>>, %arg5: memref<8x1xf32, #tpu.memory_space<vmem>>, %arg6: memref<8x256xf32, #tpu.memory_space<vmem>>) attributes {dimension_semantics = [#tpu.dimension_semantics<parallel>], iteration_bounds = array<i64: 2>, scalar_prefetch = 0 : i64, scratch_operands = 0 : i64, tpu.core_type = #tpu.core_type<tc>, window_params = [{transform_indices = @transform_0, window_bounds = array<i64: 128, 256>}, {pipeline_mode = #tpu.pipeline_mode<synchronous>, transform_indices = @transform_1, window_bounds = array<i64: 4, 128>}, {pipeline_mode = #tpu.pipeline_mode<synchronous>, transform_indices = @transform_2, window_bounds = array<i64: 4, 1>}, {pipeline_mode = #tpu.pipeline_mode<synchronous>, transform_indices = @transform_3, window_bounds = array<i64: 8, 4>}, {pipeline_mode = #tpu.pipeline_mode<synchronous>, transform_indices = @transform_4, window_bounds = array<i64: 8, 1>}, {transform_indices = @transform_5, window_bounds = array<i64: 8, 256>}]} {
    %c0 = arith.constant 0 : index
    %c0_0 = arith.constant 0 : index
    %0 = vector.load %arg2[%c0, %c0_0] : memref<4x128xf32, #tpu.memory_space<vmem>>, vector<4x128xf32>
    %c0_1 = arith.constant 0 : index
    %c0_2 = arith.constant 0 : index
    %1 = vector.load %arg1[%c0_1, %c0_2] : memref<128x256xf32, #tpu.memory_space<vmem>>, vector<128x256xf32>
    %cst = arith.constant dense<0.000000e+00> : vector<4x256xf32>
    %2 = tpu.matmul %0, %1, %cst {dimension_numbers = #tpu.dot_dimension_numbers<[1], [0], [0], [1], [0, 0, 1, 1], [], []>} : vector<4x128xf32>, vector<128x256xf32>, vector<4x256xf32> -> vector<4x256xf32>
    %c0_3 = arith.constant 0 : index
    %c0_4 = arith.constant 0 : index
    %3 = vector.load %arg3[%c0_3, %c0_4] : memref<4x1xf32, #tpu.memory_space<vmem>>, vector<4x1xf32>
    %4 = vector.broadcast %3 : vector<4x1xf32> to vector<4x256xf32>
    %5 = arith.addf %2, %4 : vector<4x256xf32>
    %cst_5 = arith.constant 0.000000e+00 : f32
    %6 = vector.broadcast %cst_5 : f32 to vector<4x256xf32>
    %7 = arith.maximumf %5, %6 : vector<4x256xf32>
    %c0_6 = arith.constant 0 : index
    %c0_7 = arith.constant 0 : index
    %8 = vector.load %arg4[%c0_6, %c0_7] : memref<8x4xf32, #tpu.memory_space<vmem>>, vector<8x4xf32>
    %cst_8 = arith.constant dense<0.000000e+00> : vector<8x256xf32>
    %9 = tpu.matmul %8, %7, %cst_8 {dimension_numbers = #tpu.dot_dimension_numbers<[1], [0], [0], [1], [0, 0, 1, 1], [], []>} : vector<8x4xf32>, vector<4x256xf32>, vector<8x256xf32> -> vector<8x256xf32>
    %c0_9 = arith.constant 0 : index
    %c0_10 = arith.constant 0 : index
    %10 = vector.load %arg5[%c0_9, %c0_10] : memref<8x1xf32, #tpu.memory_space<vmem>>, vector<8x1xf32>
    %11 = vector.broadcast %10 : vector<8x1xf32> to vector<8x256xf32>
    %12 = arith.addf %9, %11 : vector<8x256xf32>
    %cst_11 = arith.constant 0.000000e+00 : f32
    %13 = vector.broadcast %cst_11 : f32 to vector<8x256xf32>
    %14 = arith.maximumf %12, %13 : vector<8x256xf32>
    %c0_12 = arith.constant 0 : index
    %c0_13 = arith.constant 0 : index
    %15 = vector.load %arg6[%c0_12, %c0_13] : memref<8x256xf32, #tpu.memory_space<vmem>>, vector<8x256xf32>
    tpu.vector_store %arg6[%c0_12, %c0_13], %14 {strides = array<i32>} : memref<8x256xf32, #tpu.memory_space<vmem>>, vector<8x256xf32>,
    return
  }
  func.func @transform_0(%arg0: i32) -> (i32, i32) {
    %c0_i32 = arith.constant 0 : i32
    %c0_i32_0 = arith.constant 0 : i32
    return %c0_i32, %arg0 : i32, i32
  }
  func.func @transform_1(%arg0: i32) -> (i32, i32) {
    %c0_i32 = arith.constant 0 : i32
    %c0_i32_0 = arith.constant 0 : i32
    %c0_i32_1 = arith.constant 0 : i32
    return %c0_i32, %c0_i32_0 : i32, i32
  }
  func.func @transform_2(%arg0: i32) -> (i32, i32) {
    %c0_i32 = arith.constant 0 : i32
    %c0_i32_0 = arith.constant 0 : i32
    %c0_i32_1 = arith.constant 0 : i32
    return %c0_i32, %c0_i32_0 : i32, i32
  }
  func.func @transform_3(%arg0: i32) -> (i32, i32) {
    %c0_i32 = arith.constant 0 : i32
    %c0_i32_0 = arith.constant 0 : i32
    %c0_i32_1 = arith.constant 0 : i32
    return %c0_i32, %c0_i32_0 : i32, i32
  }
  func.func @transform_4(%arg0: i32) -> (i32, i32) {
    %c0_i32 = arith.constant 0 : i32
    %c0_i32_0 = arith.constant 0 : i32
    %c0_i32_1 = arith.constant 0 : i32
    return %c0_i32, %c0_i32_0 : i32, i32
  }
  func.func @transform_5(%arg0: i32) -> (i32, i32) {
    %c0_i32 = arith.constant 0 : i32
    %c0_i32_0 = arith.constant 0 : i32
    return %c0_i32, %arg0 : i32, i32
  }
}

</mosaic_0001>

<llo_original>
// kernel: conv_decomposed_forward.1
$region0: #{conv_decomposed_forward.1}
  #allocation0 [shape = 'u32[]', space=smem, size = 0x4, offset = 0x4, fixed_abs, tag = 'smem constant byte address 0x4 - core index']
  #allocation1 [shape = 'u32[144,128]{1,0:T(1,128)}', space=vmem, size = 0x12000, scoped, tag = 'internal scratch']
  %s0 = inlined_call_operand.vmem [shape: f32[128,512], index: 0, kind: input, shape index: {}]
  %s1 = inlined_call_operand.vmem [shape: f32[4,128], index: 1, kind: input, shape index: {}]
  %s2 = inlined_call_operand.vmem [shape: f32[4,1], index: 2, kind: input, shape index: {}]
  %s3 = inlined_call_operand.vmem [shape: f32[8,4], index: 3, kind: input, shape index: {}]
  %s4 = inlined_call_operand.vmem [shape: f32[8,1], index: 4, kind: input, shape index: {}]
  %s5 = inlined_call_operand.vmem [shape: f32[8,512], index: 5, kind: output, shape index: {}]
  %s6 = sld [smem:[#allocation0]]
  $region76: #{conv_decomposed_forward.1} parent=0
    _
  %s8 = ssub.s32 1, %s6
  %s9 = scalar_select 0, %s8, %s6
  $region1: #{conv_decomposed_forward.1} parent=0
    #allocation2 [shape = 'u8[262144]{0}', space=vmem, size = 0x40000, scoped, tag = 'input window, operand 0']
    loop: start=0, step=1, limit=4
    $region2: #{conv_decomposed_forward.1} parent=1 // loop_pre_header
      _
    $region3: #{conv_decomposed_forward.1} parent=1 // loop_header
      %s11 = sphi 0, %s15
      %p12 = scmp.ge.s32.totalorder %s11, 4
      %s21 = sphi 0, %s23
      %s24 = sphi 0, %s21
      %s25 = sphi 0, %s24
      %s41 = sphi 0, %s25
      %s45 = sphi 0, %s45
      %s47 = sphi 0, %s45
      %s48 = sphi 0, %s47
      %s62 = sphi 0, %s48
      %s66 = sphi 0, %s66
      %s68 = sphi 0, %s66
      %s69 = sphi 0, %s68
      %s83 = sphi 0, %s69
      %s87 = sphi 0, %s87
      %s89 = sphi 0, %s87
      %s90 = sphi 0, %s89
      %s104 = sphi 0, %s90
      %s108 = sphi 0, %s108
      %s110 = sphi 0, %s108
      %s111 = sphi 0, %s110
      %s125 = sphi 0, %s111
      %s131 = sphi 0, %s133
      %s134 = sphi 0, %s131
      %s135 = sphi 0, %s134
      %s151 = sphi 0, %s135
    $region4: #{conv_decomposed_forward.1} parent=1 // loop_header_branch
      %14 = sbr.rel (%p12) target = $region8
    $region5: #{conv_decomposed_forward.1} parent=1 // loop_body
      %s16 = ssub.s32 %s11, 1
      %s17 = ssub.s32 %s11, 2
      %s18 = sadd.s32 %s11, 1
      %s19 = ssub.s32 %s11, %s18
      %p20 = scmp.eq.s32.totalorder %s19, 0
      %s22 = sadd.s32 %s21, 1
      %s23 = scalar_select %p20, %s21, %s22
      %p26 = pneg %p20
      %p27 = scmp.eq.s32.totalorder %s11, 1
      %p28 = por %p26, %p27
      %p29 = scmp.ne.s32.totalorder %s21, %s24
      %p30 = scmp.eq.s32.totalorder %s11, 0
      %p31 = por %p29, %p30
      %p32 = scmp.ne.s32.totalorder %s21, %s24
      %p33 = scmp.eq.s32.totalorder %s16, 1
      %p34 = por %p32, %p33
      %p35 = scmp.ne.s32.totalorder %s24, %s25
      %p36 = scmp.eq.s32.totalorder %s16, 0
      %p37 = por %p35, %p36
      %p38 = scmp.ne.s32.totalorder %s24, %s25
      %p39 = scmp.eq.s32.totalorder %s17, 1
      %p40 = por %p38, %p39
      %p42 = scmp.ne.s32.totalorder %s25, %s41
      %p43 = scmp.eq.s32.totalorder %s17, 0
      %p44 = por %p42, %p43
      %s46 = sadd.s32 %s45, 1
      %p49 = scmp.eq.s32.totalorder %s11, 1
      %p50 = scmp.ne.s32.totalorder %s45, %s47
      %p51 = scmp.eq.s32.totalorder %s11, 0
      %p52 = por %p50, %p51
      %p53 = scmp.ne.s32.totalorder %s45, %s47
      %p54 = scmp.eq.s32.totalorder %s16, 1
      %p55 = por %p53, %p54
      %p56 = scmp.ne.s32.totalorder %s47, %s48
      %p57 = scmp.eq.s32.totalorder %s16, 0
      %p58 = por %p56, %p57
      %p59 = scmp.ne.s32.totalorder %s47, %s48
      %p60 = scmp.eq.s32.totalorder %s17, 1
      %p61 = por %p59, %p60
      %p63 = scmp.ne.s32.totalorder %s48, %s62
      %p64 = scmp.eq.s32.totalorder %s17, 0
      %p65 = por %p63, %p64
      %s67 = sadd.s32 %s66, 1
      %p70 = scmp.eq.s32.totalorder %s11, 1
      %p71 = scmp.ne.s32.totalorder %s66, %s68
      %p72 = scmp.eq.s32.totalorder %s11, 0
      %p73 = por %p71, %p72
      %p74 = scmp.ne.s32.totalorder %s66, %s68
      %p75 = scmp.eq.s32.totalorder %s16, 1
      %p76 = por %p74, %p75
      %p77 = scmp.ne.s32.totalorder %s68, %s69
      %p78 = scmp.eq.s32.totalorder %s16, 0
      %p79 = por %p77, %p78
      %p80 = scmp.ne.s32.totalorder %s68, %s69
      %p81 = scmp.eq.s32.totalorder %s17, 1
      %p82 = por %p80, %p81
      %p84 = scmp.ne.s32.totalorder %s69, %s83
      %p85 = scmp.eq.s32.totalorder %s17, 0
      %p86 = por %p84, %p85
      %s88 = sadd.s32 %s87, 1
      %p91 = scmp.eq.s32.totalorder %s11, 1
      %p92 = scmp.ne.s32.totalorder %s87, %s89
      %p93 = scmp.eq.s32.totalorder %s11, 0
      %p94 = por %p92, %p93
      %p95 = scmp.ne.s32.totalorder %s87, %s89
      %p96 = scmp.eq.s32.totalorder %s16, 1
      %p97 = por %p95, %p96
      %p98 = scmp.ne.s32.totalorder %s89, %s90
      %p99 = scmp.eq.s32.totalorder %s16, 0
      %p100 = por %p98, %p99
      %p101 = scmp.ne.s32.totalorder %s89, %s90
      %p102 = scmp.eq.s32.totalorder %s17, 1
      %p103 = por %p101, %p102
      %p105 = scmp.ne.s32.totalorder %s90, %s104
      %p106 = scmp.eq.s32.totalorder %s17, 0
      %p107 = por %p105, %p106
      %s109 = sadd.s32 %s108, 1
      %p112 = scmp.eq.s32.totalorder %s11, 1
      %p113 = scmp.ne.s32.totalorder %s108, %s110
      %p114 = scmp.eq.s32.totalorder %s11, 0
      %p115 = por %p113, %p114
      %p116 = scmp.ne.s32.totalorder %s108, %s110
      %p117 = scmp.eq.s32.totalorder %s16, 1
      %p118 = por %p116, %p117
      %p119 = scmp.ne.s32.totalorder %s110, %s111
      %p120 = scmp.eq.s32.totalorder %s16, 0
      %p121 = por %p119, %p120
      %p122 = scmp.ne.s32.totalorder %s110, %s111
      %p123 = scmp.eq.s32.totalorder %s17, 1
      %p124 = por %p122, %p123
      %p126 = scmp.ne.s32.totalorder %s111, %s125
      %p127 = scmp.eq.s32.totalorder %s17, 0
      %p128 = por %p126, %p127
      %s129 = ssub.s32 %s11, %s18
      %p130 = scmp.eq.s32.totalorder %s129, 0
      %s132 = sadd.s32 %s131, 1
      %s133 = scalar_select %p130, %s131, %s132
      %p136 = pneg %p130
      %p137 = scmp.eq.s32.totalorder %s11, 1
      %p138 = por %p136, %p137
      %p139 = scmp.ne.s32.totalorder %s131, %s134
      %p140 = scmp.eq.s32.totalorder %s11, 0
      %p141 = por %p139, %p140
      %p142 = scmp.ne.s32.totalorder %s131, %s134
      %p143 = scmp.eq.s32.totalorder %s16, 1
      %p144 = por %p142, %p143
      %p145 = scmp.ne.s32.totalorder %s134, %s135
      %p146 = scmp.eq.s32.totalorder %s16, 0
      %p147 = por %p145, %p146
      %p148 = scmp.ne.s32.totalorder %s134, %s135
      %p149 = scmp.eq.s32.totalorder %s17, 1
      %p150 = por %p148, %p149
      %p152 = scmp.ne.s32.totalorder %s135, %s151
      %p153 = scmp.eq.s32.totalorder %s17, 0
      %p154 = por %p152, %p153
      %p155 = scmp.le.s32.totalorder 1, %s11
      %p156 = scmp.lt.s32.totalorder %s11, 3
      %p157 = pnand %p155, %p156
      %p158 = pneg %p157
      // Predicated region
      $region9: #{conv_decomposed_forward.1} parent=5 // pred_check
        _
      $region10: #{conv_decomposed_forward.1} parent=5 // pred_check_branch
        %160 = sbr.rel (%p157) target = $region12
      $region11: #{conv_decomposed_forward.1} parent=5 // pred_region
        %s161 = ssub.s32 %s11, 1
        // Predicated region
        $region13: #{conv_decomposed_forward.1} parent=11 // pred_check
          %p162 = pneg %p58
        $region14: #{conv_decomposed_forward.1} parent=11 // pred_check_branch
          %164 = sbr.rel (%p162) target = $region16
        $region15: #{conv_decomposed_forward.1} parent=11 // pred_region
          _
        $region16: #{conv_decomposed_forward.1} parent=11 // pred_fallthru
          _
        // Predicated region
        $region17: #{conv_decomposed_forward.1} parent=11 // pred_check
          %p165 = pneg %p79
        $region18: #{conv_decomposed_forward.1} parent=11 // pred_check_branch
          %167 = sbr.rel (%p165) target = $region20
        $region19: #{conv_decomposed_forward.1} parent=11 // pred_region
          _
        $region20: #{conv_decomposed_forward.1} parent=11 // pred_fallthru
          _
        // Predicated region
        $region21: #{conv_decomposed_forward.1} parent=11 // pred_check
          %p168 = pneg %p100
        $region22: #{conv_decomposed_forward.1} parent=11 // pred_check_branch
          %170 = sbr.rel (%p168) target = $region24
        $region23: #{conv_decomposed_forward.1} parent=11 // pred_region
          _
        $region24: #{conv_decomposed_forward.1} parent=11 // pred_fallthru
          _
        // Predicated region
        $region25: #{conv_decomposed_forward.1} parent=11 // pred_check
          %p171 = pneg %p121
        $region26: #{conv_decomposed_forward.1} parent=11 // pred_check_branch
          %173 = sbr.rel (%p171) target = $region28
        $region27: #{conv_decomposed_forward.1} parent=11 // pred_region
          _
        $region28: #{conv_decomposed_forward.1} parent=11 // pred_fallthru
          _
      $region12: #{conv_decomposed_forward.1} parent=5 // pred_fallthru
        _
      %p174 = scmp.lt.s32.totalorder %s11, 2
      // Predicated region
      $region29: #{conv_decomposed_forward.1} parent=5 // pred_check
        %p175 = pneg %p174
      $region30: #{conv_decomposed_forward.1} parent=5 // pred_check_branch
        %177 = sbr.rel (%p175) target = $region32
      $region31: #{conv_decomposed_forward.1} parent=5 // pred_region
        // Predicated region
        $region33: #{conv_decomposed_forward.1} parent=31 // pred_check
          %p178 = pneg %p31
        $region34: #{conv_decomposed_forward.1} parent=31 // pred_check_branch
          %180 = sbr.rel (%p178) target = $region36
        $region35: #{conv_decomposed_forward.1} parent=31 // pred_region
          %s181 = sand.u32 %s21, 1
          %s182 = sand.u32 %s21, 1
          %s183 = smul.addr %s182, 256
          %s184 = scalar_lea.vmem [#allocation2], %s183
          %s185 = smul.u32 2, %s11
          %s186 = smul.addr %s185, 8
          %s187 = scalar_lea.vmem %s0, %s186
          // Predicated region
          $region37: #{conv_decomposed_forward.1} parent=35 // pred_check
            _
          $region38: #{conv_decomposed_forward.1} parent=35 // pred_check_branch
            %189 = sbr.rel (0) target = $region40
          $region39: #{conv_decomposed_forward.1} parent=35 // pred_region
            // Predicated region
            $region41: #{conv_decomposed_forward.1} parent=39 // pred_check
              _
            $region42: #{conv_decomposed_forward.1} parent=39 // pred_check_branch
              %191 = sbr.rel (0) target = $region44
            $region43: #{conv_decomposed_forward.1} parent=39 // pred_region
              loop: start=0, step=1, limit=1
              $region45: #{conv_decomposed_forward.1} parent=43 // loop_pre_header
                _
              $region46: #{conv_decomposed_forward.1} parent=43 // loop_header
                %s193 = sphi 0, %s197
                %p194 = scmp.ge.s32.totalorder %s193, 1
                %s198 = sphi %s187, %s187
                %s199 = sphi %s184, %s184
              $region47: #{conv_decomposed_forward.1} parent=43 // loop_header_branch
                %196 = sbr.rel (%p194) target = $region51
              $region48: #{conv_decomposed_forward.1} parent=43 // loop_body
                %v200 = vld [vmem:[%s198] sm:$0xff]
                %201 = vst [vmem:[%s199] sm:$0xff] %v200
                %v202 = vld [vmem:[%s198 + $0x8] sm:$0xff]
                %203 = vst [vmem:[%s199 + $0x8] sm:$0xff] %v202
                %v204 = vld [vmem:[%s198 + $0x20] sm:$0xff]
                %205 = vst [vmem:[%s199 + $0x10] sm:$0xff] %v204
                %v206 = vld [vmem:[%s198 + $0x28] sm:$0xff]
                %207 = vst [vmem:[%s199 + $0x18] sm:$0xff] %v206
                %v208 = vld [vmem:[%s198 + $0x40] sm:$0xff]
                %209 = vst [vmem:[%s199 + $0x20] sm:$0xff] %v208
                %v210 = vld [vmem:[%s198 + $0x48] sm:$0xff]
                %211 = vst [vmem:[%s199 + $0x28] sm:$0xff] %v210
                %v212 = vld [vmem:[%s198 + $0x60] sm:$0xff]
                %213 = vst [vmem:[%s199 + $0x30] sm:$0xff] %v212
                %v214 = vld [vmem:[%s198 + $0x68] sm:$0xff]
                %215 = vst [vmem:[%s199 + $0x38] sm:$0xff] %v214
                %v216 = vld [vmem:[%s198 + $0x80] sm:$0xff]
                %217 = vst [vmem:[%s199 + $0x40] sm:$0xff] %v216
                %v218 = vld [vmem:[%s198 + $0x88] sm:$0xff]
                %219 = vst [vmem:[%s199 + $0x48] sm:$0xff] %v218
                %v220 = vld [vmem:[%s198 + $0xa0] sm:$0xff]
                %221 = vst [vmem:[%s199 + $0x50] sm:$0xff] %v220
                %v222 = vld [vmem:[%s198 + $0xa8] sm:$0xff]
                %223 = vst [vmem:[%s199 + $0x58] sm:$0xff] %v222
                %v224 = vld [vmem:[%s198 + $0xc0] sm:$0xff]
                %225 = vst [vmem:[%s199 + $0x60] sm:$0xff] %v224
                %v226 = vld [vmem:[%s198 + $0xc8] sm:$0xff]
                %227 = vst [vmem:[%s199 + $0x68] sm:$0xff] %v226
                %v228 = vld [vmem:[%s198 + $0xe0] sm:$0xff]
                %229 = vst [vmem:[%s199 + $0x70] sm:$0xff] %v228
                %v230 = vld [vmem:[%s198 + $0xe8] sm:$0xff]
                %231 = vst [vmem:[%s199 + $0x78] sm:$0xff] %v230
                %v232 = vld [vmem:[%s198 + $0x100] sm:$0xff]
                %233 = vst [vmem:[%s199 + $0x80] sm:$0xff] %v232
                %v234 = vld [vmem:[%s198 + $0x108] sm:$0xff]
                %235 = vst [vmem:[%s199 + $0x88] sm:$0xff] %v234
                %v236 = vld [vmem:[%s198 + $0x120] sm:$0xff]
                %237 = vst [vmem:[%s199 + $0x90] sm:$0xff] %v236
                %v238 = vld [vmem:[%s198 + $0x128] sm:$0xff]
                %239 = vst [vmem:[%s199 + $0x98] sm:$0xff] %v238
                %v240 = vld [vmem:[%s198 + $0x140] sm:$0xff]
                %241 = vst [vmem:[%s199 + $0xa0] sm:$0xff] %v240
                %v242 = vld [vmem:[%s198 + $0x148] sm:$0xff]
                %243 = vst [vmem:[%s199 + $0xa8] sm:$0xff] %v242
                %v244 = vld [vmem:[%s198 + $0x160] sm:$0xff]
                %245 = vst [vmem:[%s199 + $0xb0] sm:$0xff] %v244
                %v246 = vld [vmem:[%s198 + $0x168] sm:$0xff]
                %247 = vst [vmem:[%s199 + $0xb8] sm:$0xff] %v246
                %v248 = vld [vmem:[%s198 + $0x180] sm:$0xff]
                %249 = vst [vmem:[%s199 + $0xc0] sm:$0xff] %v248
                %v250 = vld [vmem:[%s198 + $0x188] sm:$0xff]
                %251 = vst [vmem:[%s199 + $0xc8] sm:$0xff] %v250
                %v252 = vld [vmem:[%s198 + $0x1a0] sm:$0xff]
                %253 = vst [vmem:[%s199 + $0xd0] sm:$0xff] %v252
                %v254 = vld [vmem:[%s198 + $0x1a8] sm:$0xff]
                %255 = vst [vmem:[%s199 + $0xd8] sm:$0xff] %v254
                %v256 = vld [vmem:[%s198 + $0x1c0] sm:$0xff]
                %257 = vst [vmem:[%s199 + $0xe0] sm:$0xff] %v256
                %v258 = vld [vmem:[%s198 + $0x1c8] sm:$0xff]
                %259 = vst [vmem:[%s199 + $0xe8] sm:$0xff] %v258
                %v260 = vld [vmem:[%s198 + $0x1e0] sm:$0xff]
                %261 = vst [vmem:[%s199 + $0xf0] sm:$0xff] %v260
                %v262 = vld [vmem:[%s198 + $0x1e8] sm:$0xff]
                %263 = vst [vmem:[%s199 + $0xf8] sm:$0xff] %v262
              $region49: #{conv_decomposed_forward.1} parent=43 // loop_footer
                %s197 = sadd.s32 1, %s193
              $region50: #{conv_decomposed_forward.1} parent=43 // loop_footer_branch
                %192 = sbr.rel target = $region46
              $region51: #{conv_decomposed_forward.1} parent=43 // loop_exit
                _
            $region44: #{conv_decomposed_forward.1} parent=39 // pred_fallthru
              _
            // Predicated region
            $region52: #{conv_decomposed_forward.1} parent=39 // pred_check
              _
            $region53: #{conv_decomposed_forward.1} parent=39 // pred_check_branch
              %265 = sbr.rel target = $region55
            $region54: #{conv_decomposed_forward.1} parent=39 // pred_region
              _
            $region55: #{conv_decomposed_forward.1} parent=39 // pred_fallthru
              _
          $region40: #{conv_decomposed_forward.1} parent=35 // pred_fallthru
            _
          %266 = vnop
        $region36: #{conv_decomposed_forward.1} parent=31 // pred_fallthru
          _
      $region32: #{conv_decomposed_forward.1} parent=5 // pred_fallthru
        _
      %p267 = scmp.le.s32.totalorder 1, %s11
      %p268 = scmp.lt.s32.totalorder %s11, 3
      %p269 = pnand %p267, %p268
      %p270 = pneg %p269
      // Predicated region
      $region56: #{conv_decomposed_forward.1} parent=5 // pred_check
        _
      $region57: #{conv_decomposed_forward.1} parent=5 // pred_check_branch
        %272 = sbr.rel (%p269) target = $region59
      $region58: #{conv_decomposed_forward.1} parent=5 // pred_region
        %s273 = ssub.s32 %s11, 1
        %s274 = sand.u32 %s24, 1
        %s275 = sand.u32 %s24, 1
        %s276 = smul.addr %s275, 256
        %s277 = scalar_lea.vmem [#allocation2], %s276
        // Predicated region
        $region60: #{conv_decomposed_forward.1} parent=58 // pred_check
          %p278 = pneg %p37
        $region61: #{conv_decomposed_forward.1} parent=58 // pred_check_branch
          %280 = sbr.rel (%p278) target = $region63
        $region62: #{conv_decomposed_forward.1} parent=58 // pred_region
          _
        $region63: #{conv_decomposed_forward.1} parent=58 // pred_fallthru
          _
        %s281 = sand.u32 %s24, 1
        %s282 = sand.u32 %s24, 1
        %s283 = smul.addr %s282, 256
        %s284 = scalar_lea.vmem [#allocation2], %s283
        %p285 = pneg %p37
        %p286 = pneg %p34
        %p287 = pneg %p58
        %p288 = pneg %p55
        %p289 = pneg %p79
        %p290 = pneg %p76
        %p291 = pneg %p100
        %p292 = pneg %p97
        %p293 = pneg %p121
        %p294 = pneg %p118
        %p295 = pneg %p147
        %p296 = pneg %p144
        %s297 = smul.u32 2, %s16
        %p298 = scmp.lt.s32.totalorder %s297, 3
        %s299 = scalar_select %p298, %s297, 3
        %s300 = smul.addr %s299, 8
        %s301 = scalar_lea.vmem %s5, %s300
        %s302 = smul.u32 2, %s16
        %s303 = smul.u32 2, %s16
        %p304 = scmp.lt.s32.totalorder %s303, 3
        %s305 = scalar_select %p304, %s303, 3
        %s306 = smul.addr %s305, 8
        %s307 = scalar_lea.vmem %s5, %s306
        %s308 = smul.u32 2, %s16
        %v309 = vld [vmem:[%s1] sm:$0xf]
        %v310 = vld [vmem:[%s277] sm:$0xff]
        %v311 = vld [vmem:[%s277 + $0x8] sm:$0xff]
        %v312 = vld [vmem:[%s277 + $0x10] sm:$0xff]
        %v313 = vld [vmem:[%s277 + $0x18] sm:$0xff]
        %v314 = vld [vmem:[%s277 + $0x20] sm:$0xff]
        %v315 = vld [vmem:[%s277 + $0x28] sm:$0xff]
        %v316 = vld [vmem:[%s277 + $0x30] sm:$0xff]
        %v317 = vld [vmem:[%s277 + $0x38] sm:$0xff]
        %v318 = vld [vmem:[%s277 + $0x40] sm:$0xff]
        %v319 = vld [vmem:[%s277 + $0x48] sm:$0xff]
        %v320 = vld [vmem:[%s277 + $0x50] sm:$0xff]
        %v321 = vld [vmem:[%s277 + $0x58] sm:$0xff]
        %v322 = vld [vmem:[%s277 + $0x60] sm:$0xff]
        %v323 = vld [vmem:[%s277 + $0x68] sm:$0xff]
        %v324 = vld [vmem:[%s277 + $0x70] sm:$0xff]
        %v325 = vld [vmem:[%s277 + $0x78] sm:$0xff]
        %v326 = vld [vmem:[%s277 + $0x80] sm:$0xff]
        %v327 = vld [vmem:[%s277 + $0x88] sm:$0xff]
        %v328 = vld [vmem:[%s277 + $0x90] sm:$0xff]
        %v329 = vld [vmem:[%s277 + $0x98] sm:$0xff]
        %v330 = vld [vmem:[%s277 + $0xa0] sm:$0xff]
        %v331 = vld [vmem:[%s277 + $0xa8] sm:$0xff]
        %v332 = vld [vmem:[%s277 + $0xb0] sm:$0xff]
        %v333 = vld [vmem:[%s277 + $0xb8] sm:$0xff]
        %v334 = vld [vmem:[%s277 + $0xc0] sm:$0xff]
        %v335 = vld [vmem:[%s277 + $0xc8] sm:$0xff]
        %v336 = vld [vmem:[%s277 + $0xd0] sm:$0xff]
        %v337 = vld [vmem:[%s277 + $0xd8] sm:$0xff]
        %v338 = vld [vmem:[%s277 + $0xe0] sm:$0xff]
        %v339 = vld [vmem:[%s277 + $0xe8] sm:$0xff]
        %v340 = vld [vmem:[%s277 + $0xf0] sm:$0xff]
        %v341 = vld [vmem:[%s277 + $0xf8] sm:$0xff]
        %v342 = vld [vmem:[%s2] sm:$0xf]
        %344 = vset.pattern.permute.xlu0 0
        %345 = vperm.xlu0 %344, %v342
        %v346 = vpop.permute.xlu0 %345
        %348 = vmatprep.subr.mxu0 %v311
        %349 = vmatpush1.msra.mxu0 %v310
        %350 = vmatprep.subr.mxu0 %v313
        %351 = vmatpush1.msra.mxu0 %v312
        %352 = vmatprep.subr.mxu0 %v315
        %353 = vmatpush1.msra.mxu0 %v314
        %354 = vmatprep.subr.mxu0 %v317
        %355 = vmatpush1.msra.mxu0 %v316
        %356 = vmatprep.subr.mxu0 %v319
        %357 = vmatpush1.msra.mxu0 %v318
        %358 = vmatprep.subr.mxu0 %v321
        %359 = vmatpush1.msra.mxu0 %v320
        %360 = vmatprep.subr.mxu0 %v323
        %361 = vmatpush1.msra.mxu0 %v322
        %362 = vmatprep.subr.mxu0 %v325
        %363 = vmatpush1.msra.mxu0 %v324
        %364 = vmatprep.subr.mxu0 %v327
        %365 = vmatpush1.msra.mxu0 %v326
        %366 = vmatprep.subr.mxu0 %v329
        %367 = vmatpush1.msra.mxu0 %v328
        %368 = vmatprep.subr.mxu0 %v331
        %369 = vmatpush1.msra.mxu0 %v330
        %370 = vmatprep.subr.mxu0 %v333
        %371 = vmatpush1.msra.mxu0 %v332
        %372 = vmatprep.subr.mxu0 %v335
        %373 = vmatpush1.msra.mxu0 %v334
        %374 = vmatprep.subr.mxu0 %v337
        %375 = vmatpush1.msra.mxu0 %v336
        %376 = vmatprep.subr.mxu0 %v339
        %377 = vmatpush1.msra.mxu0 %v338
        %378 = vmatprep.subr.mxu0 %v341
        %379 = vmatpush1.msra.mxu0 %v340
        %380 = vmatprep.subr.mxu0 0.0
        %381 = vmatpush1.msra.mxu0 0.0
        %382 = vmatprep.subr.mxu0 0.0
        %383 = vmatpush1.msra.mxu0 0.0
        %384 = vmatprep.subr.mxu0 0.0
        %385 = vmatpush1.msra.mxu0 0.0
        %386 = vmatprep.subr.mxu0 0.0
        %387 = vmatpush1.msra.mxu0 0.0
        %388 = vmatprep.subr.mxu0 0.0
        %389 = vmatpush1.msra.mxu0 0.0
        %390 = vmatprep.subr.mxu0 0.0
        %391 = vmatpush1.msra.mxu0 0.0
        %392 = vmatprep.subr.mxu0 0.0
        %393 = vmatpush1.msra.mxu0 0.0
        %394 = vmatprep.subr.mxu0 0.0
        %395 = vmatpush1.msra.mxu0 0.0
        %396 = vmatprep.subr.mxu0 0.0
        %397 = vmatpush1.msra.mxu0 0.0
        %398 = vmatprep.subr.mxu0 0.0
        %399 = vmatpush1.msra.mxu0 0.0
        %400 = vmatprep.subr.mxu0 0.0
        %401 = vmatpush1.msra.mxu0 0.0
        %402 = vmatprep.subr.mxu0 0.0
        %403 = vmatpush1.msra.mxu0 0.0
        %404 = vmatprep.subr.mxu0 0.0
        %405 = vmatpush1.msra.mxu0 0.0
        %406 = vmatprep.subr.mxu0 0.0
        %407 = vmatpush1.msra.mxu0 0.0
        %408 = vmatprep.subr.mxu0 0.0
        %409 = vmatpush1.msra.mxu0 0.0
        %410 = vmatprep.subr.mxu0 0.0
        %411 = vmatpush1.msra.mxu0 0.0
        %412 = vmatprep.mubr.f32.mxu0 0.0
        %413 = vmatmul.mubr.f32.gmra.mrb[0].mxu0 %v309
        %v414 = vpop.f32.mrb[0].mxu0
        %v415 = vadd.f32 %v346, %v414
        %v416 = vpop.f32.mrb[0].mxu0
        %v417 = vadd.f32 %v346, %v416
        %418 = vdwg.mxu0
        %v419 = vmax.f32 %v415, 0.0
        %v420 = vmax.f32 %v417, 0.0
        %v421 = vld [vmem:[%s3] sm:$0xff]
        %v422 = vld [vmem:[%s4] sm:$0xff]
        %424 = vset.pattern.permute.xlu0 0
        %425 = vperm.xlu0 %424, %v422
        %v426 = vpop.permute.xlu0 %425
        %vm428 = vcmask 31744
        %v430 = vsel %vm428, %v421, 0
        %vm432 = vcmask 1043456
        %v434 = vsel %vm432, %v419, 0
        %v437 = vsel %vm432, %v420, 0
        %439 = vmatprep.subr.mxu0 %v437
        %440 = vmatpush1.msra.mxu0 %v434
        %441 = vmatprep.subr.mxu0 0.0
        %442 = vmatpush1.msra.mxu0 0.0
        %443 = vmatprep.subr.mxu0 0.0
        %444 = vmatpush1.msra.mxu0 0.0
        %445 = vmatprep.subr.mxu0 0.0
        %446 = vmatpush1.msra.mxu0 0.0
        %447 = vmatprep.subr.mxu0 0.0
        %448 = vmatpush1.msra.mxu0 0.0
        %449 = vmatprep.subr.mxu0 0.0
        %450 = vmatpush1.msra.mxu0 0.0
        %451 = vmatprep.subr.mxu0 0.0
        %452 = vmatpush1.msra.mxu0 0.0
        %453 = vmatprep.subr.mxu0 0.0
        %454 = vmatpush1.msra.mxu0 0.0
        %455 = vmatprep.subr.mxu0 0.0
        %456 = vmatpush1.msra.mxu0 0.0
        %457 = vmatprep.subr.mxu0 0.0
        %458 = vmatpush1.msra.mxu0 0.0
        %459 = vmatprep.subr.mxu0 0.0
        %460 = vmatpush1.msra.mxu0 0.0
        %461 = vmatprep.subr.mxu0 0.0
        %462 = vmatpush1.msra.mxu0 0.0
        %463 = vmatprep.subr.mxu0 0.0
        %464 = vmatpush1.msra.mxu0 0.0
        %465 = vmatprep.subr.mxu0 0.0
        %466 = vmatpush1.msra.mxu0 0.0
        %467 = vmatprep.subr.mxu0 0.0
        %468 = vmatpush1.msra.mxu0 0.0
        %469 = vmatprep.subr.mxu0 0.0
        %470 = vmatpush1.msra.mxu0 0.0
        %471 = vmatprep.subr.mxu0 0.0
        %472 = vmatpush1.msra.mxu0 0.0
        %473 = vmatprep.subr.mxu0 0.0
        %474 = vmatpush1.msra.mxu0 0.0
        %475 = vmatprep.subr.mxu0 0.0
        %476 = vmatpush1.msra.mxu0 0.0
        %477 = vmatprep.subr.mxu0 0.0
        %478 = vmatpush1.msra.mxu0 0.0
        %479 = vmatprep.subr.mxu0 0.0
        %480 = vmatpush1.msra.mxu0 0.0
        %481 = vmatprep.subr.mxu0 0.0
        %482 = vmatpush1.msra.mxu0 0.0
        %483 = vmatprep.subr.mxu0 0.0
        %484 = vmatpush1.msra.mxu0 0.0
        %485 = vmatprep.subr.mxu0 0.0
        %486 = vmatpush1.msra.mxu0 0.0
        %487 = vmatprep.subr.mxu0 0.0
        %488 = vmatpush1.msra.mxu0 0.0
        %489 = vmatprep.subr.mxu0 0.0
        %490 = vmatpush1.msra.mxu0 0.0
        %491 = vmatprep.subr.mxu0 0.0
        %492 = vmatpush1.msra.mxu0 0.0
        %493 = vmatprep.subr.mxu0 0.0
        %494 = vmatpush1.msra.mxu0 0.0
        %495 = vmatprep.subr.mxu0 0.0
        %496 = vmatpush1.msra.mxu0 0.0
        %497 = vmatprep.subr.mxu0 0.0
        %498 = vmatpush1.msra.mxu0 0.0
        %499 = vmatprep.subr.mxu0 0.0
        %500 = vmatpush1.msra.mxu0 0.0
        %501 = vmatprep.subr.mxu0 0.0
        %502 = vmatpush1.msra.mxu0 0.0
        %503 = vmatprep.mubr.f32.mxu0 0.0
        %504 = vmatmul.mubr.f32.gmra.mrb[0].mxu0 %v430
        %v505 = vpop.f32.mrb[0].mxu0
        %v506 = vadd.f32 %v426, %v505
        %v507 = vpop.f32.mrb[0].mxu0
        %v508 = vadd.f32 %v426, %v507
        %509 = vdwg.mxu0
        %v510 = vmax.f32 %v506, 0.0
        %v511 = vmax.f32 %v508, 0.0
        %512 = vst [vmem:[%s307] sm:$0xff] %v510
        %513 = vst [vmem:[%s307 + $0x8] sm:$0xff] %v511
        %s514 = smul.u32 2, %s16
        %p515 = scmp.lt.s32.totalorder %s514, 3
        %s516 = scalar_select %p515, %s514, 3
        %s517 = smul.addr %s516, 8
        %s518 = scalar_lea.vmem %s5, %s517
        // Predicated region
        $region64: #{conv_decomposed_forward.1} parent=58 // pred_check
          %p519 = pneg %p144
        $region65: #{conv_decomposed_forward.1} parent=58 // pred_check_branch
          %521 = sbr.rel (%p519) target = $region67
        $region66: #{conv_decomposed_forward.1} parent=58 // pred_region
          %s522 = smul.u32 2, %s16
        $region67: #{conv_decomposed_forward.1} parent=58 // pred_fallthru
          _
      $region59: #{conv_decomposed_forward.1} parent=5 // pred_fallthru
        _
      %p523 = scmp.le.s32.totalorder 2, %s11
      // Predicated region
      $region68: #{conv_decomposed_forward.1} parent=5 // pred_check
        %p524 = pneg %p523
      $region69: #{conv_decomposed_forward.1} parent=5 // pred_check_branch
        %526 = sbr.rel (%p524) target = $region71
      $region70: #{conv_decomposed_forward.1} parent=5 // pred_region
        %s527 = ssub.s32 %s11, 2
        // Predicated region
        $region72: #{conv_decomposed_forward.1} parent=70 // pred_check
          %p528 = pneg %p150
        $region73: #{conv_decomposed_forward.1} parent=70 // pred_check_branch
          %530 = sbr.rel (%p528) target = $region75
        $region74: #{conv_decomposed_forward.1} parent=70 // pred_region
          %s531 = smul.u32 2, %s17
          %p532 = scmp.lt.s32.totalorder %s531, 3
          %s533 = scalar_select %p532, %s531, 3
          %s534 = smul.addr %s533, 8
          %s535 = scalar_lea.vmem %s5, %s534
        $region75: #{conv_decomposed_forward.1} parent=70 // pred_fallthru
          _
      $region71: #{conv_decomposed_forward.1} parent=5 // pred_fallthru
        _
    $region6: #{conv_decomposed_forward.1} parent=1 // loop_footer
      %s15 = sadd.s32 1, %s11
    $region7: #{conv_decomposed_forward.1} parent=1 // loop_footer_branch
      %10 = sbr.rel target = $region3
    $region8: #{conv_decomposed_forward.1} parent=1 // loop_exit
      _

</llo_original>
